<compile_context>
chip_gen: v7x
topology: tpu7x:2x2x1
jax: 0.10.0
libtpu: 0.0.40
codegen_flags: <defaults>
</compile_context>

<pallas_src>
import math

import jax
import jax.numpy as jnp
from jax.experimental import pallas as pl
from jax.experimental.pallas import tpu as pltpu

_LN_EPS = 1e-5   # nn.LayerNorm default
_LANE = 128
_SUB = 8
_VMEM_LIMIT = 32 * 1024 * 1024


def _round_up(x, m):
    return ((x + m - 1) // m) * m


def _pick_tile(m, target):
    """Row tile: multiple of 8, <= target, >= 2 grid steps whenever m allows."""
    t = min(target, _round_up(m, _SUB))
    if m > _SUB:
        t = min(t, _round_up((m + 1) // 2, _SUB))
    return max(t, _SUB)


def _pad2d(a, rows, cols):
    r, c = a.shape
    if r == rows and c == cols:
        return a
    return jnp.pad(a, ((0, rows - r), (0, cols - c)))


# -------- kernel 1: reducer conv + LayerNorm + concatenated K|V projection ------

def pallas_reduce_kv(patches, w_red, b_red, gamma, beta, wk, bk, wv, bv,
                     channels, *, tm_target=512):
    """Fused: (patches @ W_red + b) -> LayerNorm(C) -> concatenated K|V proj.

    patches: (M, r*r*C) rows of the non-overlapping reducer conv.
    Returns kv: (M, Ckv) bfloat16 with K in columns [0, C) and V in [C, 2C).
    """
    M, Kr = patches.shape
    C = channels
    Cln = _round_up(C, _LANE)        # conv / LayerNorm width in VMEM
    Ckv = _round_up(2 * C, _LANE)    # lane-dense concatenated K|V output width
    tm = _pick_tile(M, tm_target)
    Mp = _round_up(M, tm)

    pp = _pad2d(patches, Mp, Kr)
    w_red_p = _pad2d(w_red, Kr, Cln).astype(jnp.bfloat16)
    b_red_p = _pad2d(b_red.reshape(1, C), 1, Cln).astype(jnp.float32)
    g_p = _pad2d(gamma.reshape(1, C), 1, Cln).astype(jnp.float32)
    be_p = _pad2d(beta.reshape(1, C), 1, Cln).astype(jnp.float32)
    # One concatenated K|V weight -> single matmul, single lane-dense store stream.
    wkv = jnp.zeros((Cln, Ckv), jnp.float32)
    wkv = wkv.at[:C, :C].set(wk).at[:C, C:2 * C].set(wv)
    wkv = wkv.astype(jnp.bfloat16)
    bkv = jnp.zeros((1, Ckv), jnp.float32)
    bkv = bkv.at[0, :C].set(bk).at[0, C:2 * C].set(bv)

    def kernel(p_ref, wr_ref, br_ref, g_ref, be_ref, wkv_ref, bkv_ref, kv_ref):
        pt = p_ref[...].astype(jnp.bfloat16)
        red = jnp.dot(pt, wr_ref[...], preferred_element_type=jnp.float32)
        red = red + br_ref[...]
        # LayerNorm over the true C channels; padded lanes are exactly zero
        # (zero weight columns / zero bias), so plain lane sums are correct.
        lane = jax.lax.broadcasted_iota(jnp.int32, (1, Cln), 1)
        mu = jnp.sum(red, axis=-1, keepdims=True) * (1.0 / C)
        d = jnp.where(lane < C, red - mu, 0.0)
        var = jnp.sum(d * d, axis=-1, keepdims=True) * (1.0 / C)
        y = d * jax.lax.rsqrt(var + _LN_EPS) * g_ref[...] + be_ref[...]
        kv = jnp.dot(y.astype(jnp.bfloat16), wkv_ref[...],
                     preferred_element_type=jnp.float32) + bkv_ref[...]
        kv_ref[...] = kv.astype(kv_ref.dtype)

    kv = pl.pallas_call(
        kernel,
        out_shape=jax.ShapeDtypeStruct((Mp, Ckv), jnp.bfloat16),
        grid=(Mp // tm,),
        in_specs=[
            pl.BlockSpec((tm, Kr), lambda i: (i, 0)),
            pl.BlockSpec((Kr, Cln), lambda i: (0, 0)),
            pl.BlockSpec((1, Cln), lambda i: (0, 0)),
            pl.BlockSpec((1, Cln), lambda i: (0, 0)),
            pl.BlockSpec((1, Cln), lambda i: (0, 0)),
            pl.BlockSpec((Cln, Ckv), lambda i: (0, 0)),
            pl.BlockSpec((1, Ckv), lambda i: (0, 0)),
        ],
        out_specs=pl.BlockSpec((tm, Ckv), lambda i: (i, 0)),
        compiler_params=pltpu.CompilerParams(
            dimension_semantics=("parallel",), vmem_limit_bytes=_VMEM_LIMIT),
    )(pp, w_red_p, b_red_p, g_p, be_p, wkv, bkv)
    return kv[:M]


# -------- kernel 2: fused Q projection + all-head attention + out_proj ----------

def pallas_attention(x_tok, kv, wq, bq, wo, bo, channels, num_heads, *,
                     lq_target=256):
    """x_tok: (B, Lq, C) f32; kv: (B, Lk, Ckv) bf16 (K|V concatenated, lane-dense).

    Per grid step (one batch element, one Lq tile): q = x @ wq_scaled + bq_scaled
    in VMEM, per-head softmax attention in f32, concat-head PV, single out_proj
    matmul.  Returns (B, Lq, C) float32.
    """
    B, Lq, C_in = x_tok.shape
    _, Lk, Ckv = kv.shape
    C = channels
    nh = num_heads
    Dh = C // nh
    assert C_in == C and nh * Dh == C
    Cp = _round_up(C, _LANE)
    scale = 1.0 / math.sqrt(Dh)

    lt = _pick_tile(Lq, lq_target)
    Lqp = _round_up(Lq, lt)
    xp = x_tok if Lqp == Lq else jnp.pad(x_tok, ((0, 0), (0, Lqp - Lq), (0, 0)))

    wq_s = (wq * scale).astype(jnp.bfloat16)                 # fold 1/sqrt(Dh)
    bq_s = (bq * scale).reshape(1, C).astype(jnp.float32)
    wo_p = _pad2d(wo, C, Cp).astype(jnp.bfloat16)
    bo_p = _pad2d(bo.reshape(1, C), 1, Cp).astype(jnp.float32)

    def kernel(x_ref, wq_ref, bq_ref, kv_ref, wo_ref, bo_ref, o_ref):
        xb = x_ref[0].astype(jnp.bfloat16)                   # (lt, C)
        q = jnp.dot(xb, wq_ref[...], preferred_element_type=jnp.float32)
        qb = (q + bq_ref[...]).astype(jnp.bfloat16)          # scale pre-folded
        kvt = kv_ref[0]                                      # (Lk, Ckv) bf16
        o_parts = []
        for h in range(nh):                                  # static unroll
            lo = h * Dh
            qh = qb[:, lo:lo + Dh]                           # (lt, Dh)
            kh = kvt[:, lo:lo + Dh]                          # (Lk, Dh)
            vh = kvt[:, C + lo:C + lo + Dh]                  # (Lk, Dh)
            s = jax.lax.dot_general(qh, kh, (((1,), (1,)), ((), ())),
                                    preferred_element_type=jnp.float32)
            m = jnp.max(s, axis=-1, keepdims=True)
            p = jnp.exp(s - m)
            denom = jnp.sum(p, axis=-1, keepdims=True)
            p = p * pl.reciprocal(denom, approx=True)        # EUP, not VALU div
            o_parts.append(jnp.dot(p.astype(jnp.bfloat16), vh,
                                   preferred_element_type=jnp.float32))
        o = jnp.concatenate(o_parts, axis=-1).astype(jnp.bfloat16)   # (lt, C)
        out = jnp.dot(o, wo_ref[...], preferred_element_type=jnp.float32)
        o_ref[0, :, :] = (out + bo_ref[...]).astype(o_ref.dtype)

    out = pl.pallas_call(
        kernel,
        out_shape=jax.ShapeDtypeStruct((B, Lqp, Cp), jnp.float32),
        grid=(B, Lqp // lt),
        in_specs=[
            pl.BlockSpec((1, lt, C), lambda b, i: (b, i, 0)),
            pl.BlockSpec((C, C), lambda b, i: (0, 0)),
            pl.BlockSpec((1, C), lambda b, i: (0, 0)),
            pl.BlockSpec((1, Lk, Ckv), lambda b, i: (b, 0, 0)),
            pl.BlockSpec((C, Cp), lambda b, i: (0, 0)),
            pl.BlockSpec((1, Cp), lambda b, i: (0, 0)),
        ],
        out_specs=pl.BlockSpec((1, lt, Cp), lambda b, i: (b, i, 0)),
        compiler_params=pltpu.CompilerParams(
            dimension_semantics=("parallel", "parallel"),
            vmem_limit_bytes=_VMEM_LIMIT),
    )(xp, wq_s, bq_s, kv, wo_p, bo_p)
    return out[:, :Lq, :C]


# ------------------------------- forward pass ---------------------------------

def efficient_mha_forward(x_nchw, params, num_heads, reduction_ratio):
    B, C, H, W = x_nchw.shape
    r = reduction_ratio

    x = jnp.transpose(x_nchw, (0, 2, 3, 1))                  # NCHW -> NHWC
    Lq = H * W
    Hr, Wr = H // r, W // r
    Lk = Hr * Wr

    # Reducer conv has kernel == stride and no padding -> non-overlapping
    # patchify; rows are (b, hr, wr), features ordered (ki, kj, c_in) to match
    # w_red's row layout.
    # TODO(synk): fuse this swizzle into kernel 1 (DMA (r, W, C) slabs, swap
    # r <-> Wr in VMEM) to save one XLA HBM pass over x.
    patches = (x.reshape(B, Hr, r, Wr, r, C)
                 .transpose(0, 1, 3, 2, 4, 5)
                 .reshape(B * Lk, r * r * C))

    kv = pallas_reduce_kv(patches, params["w_red"], params["b_red"],
                          params["ln_g"], params["ln_b"],
                          params["wk"], params["bk"],
                          params["wv"], params["bv"], C)
    kv = kv.reshape(B, Lk, kv.shape[-1])                     # (B, Lk, Ckv) bf16

    out = pallas_attention(x.reshape(B, Lq, C), kv,
                           params["wq"], params["bq"],
                           params["wo"], params["bo"], C, num_heads)  # (B, Lq, C)
    return out.reshape(B, H, W, C).transpose(0, 3, 1, 2)              # -> NCHW


# ------------------------- pure-JAX reference (check) --------------------------

def reference_forward(x_nchw, params, num_heads, reduction_ratio):
    B, C, H, W = x_nchw.shape
    r, nh = reduction_ratio, num_heads
    Dh = C // nh
    x = jnp.transpose(x_nchw, (0, 2, 3, 1))
    Hr, Wr = H // r, W // r
    patches = (x.reshape(B, Hr, r, Wr, r, C).transpose(0, 1, 3, 2, 4, 5)
                .reshape(B, Hr * Wr, r * r * C))
    red = patches @ params["w_red"] + params["b_red"]
    mu = jnp.mean(red, axis=-1, keepdims=True)
    var = jnp.mean((red - mu) ** 2, axis=-1, keepdims=True)
    red = (red - mu) / jnp.sqrt(var + _LN_EPS) * params["ln_g"] + params["ln_b"]

    xt = x.reshape(B, H * W, C)
    q = xt @ params["wq"] + params["bq"]
    k = red @ params["wk"] + params["bk"]
    v = red @ params["wv"] + params["bv"]

    def split(t):
        return t.reshape(B, -1, nh, Dh).transpose(0, 2, 1, 3)

    qh, kh, vh = split(q), split(k), split(v)
    s = jnp.einsum("bhqd,bhkd->bhqk", qh, kh) / math.sqrt(Dh)
    p = jax.nn.softmax(s, axis=-1)
    o = jnp.einsum("bhqk,bhkd->bhqd", p, vh)
    o = o.transpose(0, 2, 1, 3).reshape(B, H * W, C)
    out = o @ params["wo"] + params["bo"]
    return out.reshape(B, H, W, C).transpose(0, 3, 1, 2)


# ----------------------------------- main --------------------------------------

if __name__ == "__main__":
    B, C, H, W = 2, 64, 16, 16
    num_heads = 8          # Dh = 8
    reduction_ratio = 2    # reduced tokens: (H/2)*(W/2) = 64 per batch

    key = jax.random.PRNGKey(0)
    keys = jax.random.split(key, 12)
    x = jax.random.normal(keys[0], (B, C, H, W), dtype=jnp.float32)

    def nrm(k_, shape):
        return 0.02 * jax.random.normal(k_, shape, dtype=jnp.float32)

    params = {
        # reducer Conv2d(C, C, k=r, s=r): weight rows in (ki, kj, c_in) order
        "w_red": nrm(keys[1], (reduction_ratio * reduction_ratio * C, C)),
        "b_red": nrm(keys[2], (C,)),
        # LayerNorm2d
        "ln_g": jnp.ones((C,), jnp.float32),
        "ln_b": jnp.zeros((C,), jnp.float32),
        # nn.MultiheadAttention in_proj (already transposed: x @ w) + out_proj
        "wq": nrm(keys[3], (C, C)), "bq": nrm(keys[4], (C,)),
        "wk": nrm(keys[5], (C, C)), "bk": nrm(keys[6], (C,)),
        "wv": nrm(keys[7], (C, C)), "bv": nrm(keys[8], (C,)),
        "wo": nrm(keys[9], (C, C)), "bo": nrm(keys[10], (C,)),
    }
    # TODO(synk): attention dropout (p=0 by default in nn.MultiheadAttention) is identity.

    out = efficient_mha_forward(x, params, num_heads, reduction_ratio)
    out = jax.block_until_ready(out)

    assert out.shape == (B, C, H, W), out.shape
    assert bool(jnp.all(jnp.isfinite(out)))

    ref = reference_forward(x, params, num_heads, reduction_ratio)
    err = float(jnp.max(jnp.abs(out - ref)))
    assert err < 5e-2, f"max abs err vs reference: {err}"
    print("KERNEL_OK")
</pallas_src>

<mosaic_0001>
module attributes {stable_mosaic.version = 11 : i64} {
  func.func @kernel(%arg0: i32, %arg1: memref<64x256xf32, #tpu.memory_space<vmem>>, %arg2: memref<256x128xbf16, #tpu.memory_space<vmem>>, %arg3: memref<1x128xf32, #tpu.memory_space<vmem>>, %arg4: memref<1x128xf32, #tpu.memory_space<vmem>>, %arg5: memref<1x128xf32, #tpu.memory_space<vmem>>, %arg6: memref<128x128xbf16, #tpu.memory_space<vmem>>, %arg7: memref<1x128xf32, #tpu.memory_space<vmem>>, %arg8: memref<64x128xbf16, #tpu.memory_space<vmem>>) attributes {dimension_semantics = [#tpu.dimension_semantics<parallel>], iteration_bounds = array<i64: 2>, scalar_prefetch = 0 : i64, scratch_operands = 0 : i64, tpu.core_type = #tpu.core_type<tc>, window_params = [{transform_indices = @transform_0, window_bounds = array<i64: 64, 256>}, {pipeline_mode = #tpu.pipeline_mode<synchronous>, transform_indices = @transform_1, window_bounds = array<i64: 256, 128>}, {pipeline_mode = #tpu.pipeline_mode<synchronous>, transform_indices = @transform_2, window_bounds = array<i64: 1, 128>}, {pipeline_mode = #tpu.pipeline_mode<synchronous>, transform_indices = @transform_3, window_bounds = array<i64: 1, 128>}, {pipeline_mode = #tpu.pipeline_mode<synchronous>, transform_indices = @transform_4, window_bounds = array<i64: 1, 128>}, {pipeline_mode = #tpu.pipeline_mode<synchronous>, transform_indices = @transform_5, window_bounds = array<i64: 128, 128>}, {pipeline_mode = #tpu.pipeline_mode<synchronous>, transform_indices = @transform_6, window_bounds = array<i64: 1, 128>}, {transform_indices = @transform_7, window_bounds = array<i64: 64, 128>}]} {
    %c0 = arith.constant 0 : index
    %c0_0 = arith.constant 0 : index
    %0 = vector.load %arg1[%c0, %c0_0] : memref<64x256xf32, #tpu.memory_space<vmem>>, vector<64x256xf32>
    %1 = arith.truncf %0 : vector<64x256xf32> to vector<64x256xbf16>
    %c0_1 = arith.constant 0 : index
    %c0_2 = arith.constant 0 : index
    %2 = vector.load %arg2[%c0_1, %c0_2] : memref<256x128xbf16, #tpu.memory_space<vmem>>, vector<256x128xbf16>
    %cst = arith.constant dense<0.000000e+00> : vector<64x128xf32>
    %3 = tpu.matmul %1, %2, %cst {dimension_numbers = #tpu.dot_dimension_numbers<[1], [0], [0], [1], [0, 0, 1, 1], [], []>} : vector<64x256xbf16>, vector<256x128xbf16>, vector<64x128xf32> -> vector<64x128xf32>
    %c0_3 = arith.constant 0 : index
    %c0_4 = arith.constant 0 : index
    %4 = vector.load %arg3[%c0_3, %c0_4] : memref<1x128xf32, #tpu.memory_space<vmem>>, vector<1x128xf32>
    %5 = vector.broadcast %4 : vector<1x128xf32> to vector<64x128xf32>
    %6 = arith.addf %3, %5 : vector<64x128xf32>
    %7 = tpu.iota {dimensions = array<i32: 1>} : vector<1x128xi32>
    %cst_5 = arith.constant dense<0.000000e+00> : vector<64xf32>
    %8 = vector.multi_reduction <add>, %6, %cst_5 [1] : vector<64x128xf32> to vector<64xf32>
    %9 = vector.shape_cast %8 : vector<64xf32> to vector<64x1xf32>
    %cst_6 = arith.constant 1.562500e-02 : f32
    %10 = vector.broadcast %cst_6 : f32 to vector<64x1xf32>
    %11 = arith.mulf %9, %10 : vector<64x1xf32>
    %c64_i32 = arith.constant 64 : i32
    %12 = vector.broadcast %c64_i32 : i32 to vector<1x128xi32>
    %13 = arith.cmpi slt, %7, %12 : vector<1x128xi32>
    %14 = vector.broadcast %11 : vector<64x1xf32> to vector<64x128xf32>
    %15 = arith.subf %6, %14 : vector<64x128xf32>
    %cst_7 = arith.constant 0.000000e+00 : f32
    %16 = vector.shape_cast %13 : vector<1x128xi1> to vector<1x128xi1>
    %17 = vector.broadcast %16 : vector<1x128xi1> to vector<64x128xi1>
    %18 = vector.broadcast %cst_7 : f32 to vector<64x128xf32>
    %19 = arith.select %17, %15, %18 : vector<64x128xi1>, vector<64x128xf32>
    %20 = arith.mulf %19, %19 : vector<64x128xf32>
    %cst_8 = arith.constant dense<0.000000e+00> : vector<64xf32>
    %21 = vector.multi_reduction <add>, %20, %cst_8 [1] : vector<64x128xf32> to vector<64xf32>
    %22 = vector.shape_cast %21 : vector<64xf32> to vector<64x1xf32>
    %cst_9 = arith.constant 1.562500e-02 : f32
    %23 = vector.broadcast %cst_9 : f32 to vector<64x1xf32>
    %24 = arith.mulf %22, %23 : vector<64x1xf32>
    %cst_10 = arith.constant 9.99999974E-6 : f32
    %25 = vector.broadcast %cst_10 : f32 to vector<64x1xf32>
    %26 = arith.addf %24, %25 : vector<64x1xf32>
    %27 = math.rsqrt %26 : vector<64x1xf32>
    %28 = vector.broadcast %27 : vector<64x1xf32> to vector<64x128xf32>
    %29 = arith.mulf %19, %28 : vector<64x128xf32>
    %c0_11 = arith.constant 0 : index
    %c0_12 = arith.constant 0 : index
    %30 = vector.load %arg4[%c0_11, %c0_12] : memref<1x128xf32, #tpu.memory_space<vmem>>, vector<1x128xf32>
    %31 = vector.broadcast %30 : vector<1x128xf32> to vector<64x128xf32>
    %32 = arith.mulf %29, %31 : vector<64x128xf32>
    %c0_13 = arith.constant 0 : index
    %c0_14 = arith.constant 0 : index
    %33 = vector.load %arg5[%c0_13, %c0_14] : memref<1x128xf32, #tpu.memory_space<vmem>>, vector<1x128xf32>
    %34 = vector.broadcast %33 : vector<1x128xf32> to vector<64x128xf32>
    %35 = arith.addf %32, %34 : vector<64x128xf32>
    %36 = arith.truncf %35 : vector<64x128xf32> to vector<64x128xbf16>
    %c0_15 = arith.constant 0 : index
    %c0_16 = arith.constant 0 : index
    %37 = vector.load %arg6[%c0_15, %c0_16] : memref<128x128xbf16, #tpu.memory_space<vmem>>, vector<128x128xbf16>
    %cst_17 = arith.constant dense<0.000000e+00> : vector<64x128xf32>
    %38 = tpu.matmul %36, %37, %cst_17 {dimension_numbers = #tpu.dot_dimension_numbers<[1], [0], [0], [1], [0, 0, 1, 1], [], []>} : vector<64x128xbf16>, vector<128x128xbf16>, vector<64x128xf32> -> vector<64x128xf32>
    %c0_18 = arith.constant 0 : index
    %c0_19 = arith.constant 0 : index
    %39 = vector.load %arg7[%c0_18, %c0_19] : memref<1x128xf32, #tpu.memory_space<vmem>>, vector<1x128xf32>
    %40 = vector.broadcast %39 : vector<1x128xf32> to vector<64x128xf32>
    %41 = arith.addf %38, %40 : vector<64x128xf32>
    %42 = arith.truncf %41 : vector<64x128xf32> to vector<64x128xbf16>
    %c0_20 = arith.constant 0 : index
    %c0_21 = arith.constant 0 : index
    %43 = vector.load %arg8[%c0_20, %c0_21] : memref<64x128xbf16, #tpu.memory_space<vmem>>, vector<64x128xbf16>
    tpu.vector_store %arg8[%c0_20, %c0_21], %42 {strides = array<i32>} : memref<64x128xbf16, #tpu.memory_space<vmem>>, vector<64x128xbf16>,
    return
  }
  func.func @transform_0(%arg0: i32) -> (i32, i32) {
    %c0_i32 = arith.constant 0 : i32
    %c0_i32_0 = arith.constant 0 : i32
    return %arg0, %c0_i32 : i32, i32
  }
  func.func @transform_1(%arg0: i32) -> (i32, i32) {
    %c0_i32 = arith.constant 0 : i32
    %c0_i32_0 = arith.constant 0 : i32
    %c0_i32_1 = arith.constant 0 : i32
    return %c0_i32, %c0_i32_0 : i32, i32
  }
  func.func @transform_2(%arg0: i32) -> (i32, i32) {
    %c0_i32 = arith.constant 0 : i32
    %c0_i32_0 = arith.constant 0 : i32
    %c0_i32_1 = arith.constant 0 : i32
    return %c0_i32, %c0_i32_0 : i32, i32
  }
  func.func @transform_3(%arg0: i32) -> (i32, i32) {
    %c0_i32 = arith.constant 0 : i32
    %c0_i32_0 = arith.constant 0 : i32
    %c0_i32_1 = arith.constant 0 : i32
    return %c0_i32, %c0_i32_0 : i32, i32
  }
  func.func @transform_4(%arg0: i32) -> (i32, i32) {
    %c0_i32 = arith.constant 0 : i32
    %c0_i32_0 = arith.constant 0 : i32
    %c0_i32_1 = arith.constant 0 : i32
    return %c0_i32, %c0_i32_0 : i32, i32
  }
  func.func @transform_5(%arg0: i32) -> (i32, i32) {
    %c0_i32 = arith.constant 0 : i32
    %c0_i32_0 = arith.constant 0 : i32
    %c0_i32_1 = arith.constant 0 : i32
    return %c0_i32, %c0_i32_0 : i32, i32
  }
  func.func @transform_6(%arg0: i32) -> (i32, i32) {
    %c0_i32 = arith.constant 0 : i32
    %c0_i32_0 = arith.constant 0 : i32
    %c0_i32_1 = arith.constant 0 : i32
    return %c0_i32, %c0_i32_0 : i32, i32
  }
  func.func @transform_7(%arg0: i32) -> (i32, i32) {
    %c0_i32 = arith.constant 0 : i32
    %c0_i32_0 = arith.constant 0 : i32
    return %arg0, %c0_i32 : i32, i32
  }
}

</mosaic_0001>

<llo_original>
// kernel: tpu_custom_call.1
$region0: #{tpu_custom_call.1}
  #allocation0 [shape = 'u32[]', space=smem, size = 0x4, offset = 0x4, fixed_abs, tag = 'smem constant byte address 0x4 - core index']
  #allocation1 [shape = 'u32[144,128]{1,0:T(1,128)}', space=vmem, size = 0x12000, scoped, tag = 'internal scratch']
  %s0 = inlined_call_operand.hbm [shape: f32[128,256], index: 0, kind: input, shape index: {}]
  %s1 = inlined_call_operand.hbm [shape: bf16[256,128], index: 1, kind: input, shape index: {}]
  %s2 = inlined_call_operand.vmem [shape: f32[1,128], index: 2, kind: input, shape index: {}]
  %s3 = inlined_call_operand.vmem [shape: f32[1,128], index: 3, kind: input, shape index: {}]
  %s4 = inlined_call_operand.vmem [shape: f32[1,128], index: 4, kind: input, shape index: {}]
  %s5 = inlined_call_operand.hbm [shape: bf16[128,128], index: 5, kind: input, shape index: {}]
  %s6 = inlined_call_operand.vmem [shape: f32[1,128], index: 6, kind: input, shape index: {}]
  %s7 = inlined_call_operand.hbm [shape: bf16[128,128], index: 7, kind: output, shape index: {}]
  %s8 = sld [smem:[#allocation0]]
  $region73: #{tpu_custom_call.1} parent=0
    _
  %s10 = ssub.s32 1, %s8
  %s11 = scalar_select 0, %s10, %s8
  $region1: #{tpu_custom_call.1} parent=0
    #allocation2 [shape = 'u8[131072]{0}', space=vmem, size = 0x20000, scoped, tag = 'input window, operand 0']
    #allocation3 [shape = 's32[2]{0}', space=sflag, size = 0x8, scoped, tag = 'scoped memory for tpu_custom_call.1']
    #allocation4 [shape = 's32[2]{0}', space=sflag, size = 0x8, scoped, tag = 'scoped memory for tpu_custom_call.1']
    #allocation5 [shape = 'u8[65536]{0}', space=vmem, size = 0x10000, scoped, tag = 'input window, operand 1, single buffered']
    #allocation6 [shape = 's32[1]{0}', space=sflag, size = 0x4, scoped, tag = 'scoped memory for tpu_custom_call.1']
    #allocation7 [shape = 'u8[32768]{0}', space=vmem, size = 0x8000, scoped, tag = 'input window, operand 5, single buffered']
    #allocation8 [shape = 'u8[32768]{0}', space=vmem, size = 0x8000, scoped, tag = 'output window, operand 0']
    %12 = vsyncpa [#allocation3], 0
    %s13 = scalar_lea.sflag [#allocation3], 1
    %14 = vsyncpa %s13, 0
    %15 = vsyncpa [#allocation6], 0
    %16 = vsyncpa [#allocation4], 0
    %s17 = scalar_lea.sflag [#allocation4], 1
    %18 = vsyncpa %s17, 0
    loop: start=0, step=1, limit=4
    $region2: #{tpu_custom_call.1} parent=1 // loop_pre_header
      _
    $region3: #{tpu_custom_call.1} parent=1 // loop_header
      %s20 = sphi 0, %s24
      %p21 = scmp.ge.s32.totalorder %s20, 4
      %s30 = sphi 0, %s32
      %s33 = sphi 0, %s30
      %s34 = sphi 0, %s33
      %s50 = sphi 0, %s34
      %s54 = sphi 0, %s54
      %s56 = sphi 0, %s54
      %s57 = sphi 0, %s56
      %s71 = sphi 0, %s57
      %s75 = sphi 0, %s75
      %s77 = sphi 0, %s75
      %s78 = sphi 0, %s77
      %s92 = sphi 0, %s78
      %s96 = sphi 0, %s96
      %s98 = sphi 0, %s96
      %s99 = sphi 0, %s98
      %s113 = sphi 0, %s99
      %s117 = sphi 0, %s117
      %s119 = sphi 0, %s117
      %s120 = sphi 0, %s119
      %s134 = sphi 0, %s120
      %s138 = sphi 0, %s138
      %s140 = sphi 0, %s138
      %s141 = sphi 0, %s140
      %s155 = sphi 0, %s141
      %s159 = sphi 0, %s159
      %s161 = sphi 0, %s159
      %s162 = sphi 0, %s161
      %s176 = sphi 0, %s162
      %s182 = sphi 0, %s184
      %s185 = sphi 0, %s182
      %s186 = sphi 0, %s185
      %s202 = sphi 0, %s186
    $region4: #{tpu_custom_call.1} parent=1 // loop_header_branch
      %23 = sbr.rel (%p21) target = $region8
    $region5: #{tpu_custom_call.1} parent=1 // loop_body
      %s25 = ssub.s32 %s20, 1
      %s26 = ssub.s32 %s20, 2
      %s27 = sadd.s32 %s20, 1
      %s28 = ssub.s32 %s20, %s27
      %p29 = scmp.eq.s32.totalorder %s28, 0
      %s31 = sadd.s32 %s30, 1
      %s32 = scalar_select %p29, %s30, %s31
      %p35 = pneg %p29
      %p36 = scmp.eq.s32.totalorder %s20, 1
      %p37 = por %p35, %p36
      %p38 = scmp.ne.s32.totalorder %s30, %s33
      %p39 = scmp.eq.s32.totalorder %s20, 0
      %p40 = por %p38, %p39
      %p41 = scmp.ne.s32.totalorder %s30, %s33
      %p42 = scmp.eq.s32.totalorder %s25, 1
      %p43 = por %p41, %p42
      %p44 = scmp.ne.s32.totalorder %s33, %s34
      %p45 = scmp.eq.s32.totalorder %s25, 0
      %p46 = por %p44, %p45
      %p47 = scmp.ne.s32.totalorder %s33, %s34
      %p48 = scmp.eq.s32.totalorder %s26, 1
      %p49 = por %p47, %p48
      %p51 = scmp.ne.s32.totalorder %s34, %s50
      %p52 = scmp.eq.s32.totalorder %s26, 0
      %p53 = por %p51, %p52
      %s55 = sadd.s32 %s54, 1
      %p58 = scmp.eq.s32.totalorder %s20, 1
      %p59 = scmp.ne.s32.totalorder %s54, %s56
      %p60 = scmp.eq.s32.totalorder %s20, 0
      %p61 = por %p59, %p60
      %p62 = scmp.ne.s32.totalorder %s54, %s56
      %p63 = scmp.eq.s32.totalorder %s25, 1
      %p64 = por %p62, %p63
      %p65 = scmp.ne.s32.totalorder %s56, %s57
      %p66 = scmp.eq.s32.totalorder %s25, 0
      %p67 = por %p65, %p66
      %p68 = scmp.ne.s32.totalorder %s56, %s57
      %p69 = scmp.eq.s32.totalorder %s26, 1
      %p70 = por %p68, %p69
      %p72 = scmp.ne.s32.totalorder %s57, %s71
      %p73 = scmp.eq.s32.totalorder %s26, 0
      %p74 = por %p72, %p73
      %s76 = sadd.s32 %s75, 1
      %p79 = scmp.eq.s32.totalorder %s20, 1
      %p80 = scmp.ne.s32.totalorder %s75, %s77
      %p81 = scmp.eq.s32.totalorder %s20, 0
      %p82 = por %p80, %p81
      %p83 = scmp.ne.s32.totalorder %s75, %s77
      %p84 = scmp.eq.s32.totalorder %s25, 1
      %p85 = por %p83, %p84
      %p86 = scmp.ne.s32.totalorder %s77, %s78
      %p87 = scmp.eq.s32.totalorder %s25, 0
      %p88 = por %p86, %p87
      %p89 = scmp.ne.s32.totalorder %s77, %s78
      %p90 = scmp.eq.s32.totalorder %s26, 1
      %p91 = por %p89, %p90
      %p93 = scmp.ne.s32.totalorder %s78, %s92
      %p94 = scmp.eq.s32.totalorder %s26, 0
      %p95 = por %p93, %p94
      %s97 = sadd.s32 %s96, 1
      %p100 = scmp.eq.s32.totalorder %s20, 1
      %p101 = scmp.ne.s32.totalorder %s96, %s98
      %p102 = scmp.eq.s32.totalorder %s20, 0
      %p103 = por %p101, %p102
      %p104 = scmp.ne.s32.totalorder %s96, %s98
      %p105 = scmp.eq.s32.totalorder %s25, 1
      %p106 = por %p104, %p105
      %p107 = scmp.ne.s32.totalorder %s98, %s99
      %p108 = scmp.eq.s32.totalorder %s25, 0
      %p109 = por %p107, %p108
      %p110 = scmp.ne.s32.totalorder %s98, %s99
      %p111 = scmp.eq.s32.totalorder %s26, 1
      %p112 = por %p110, %p111
      %p114 = scmp.ne.s32.totalorder %s99, %s113
      %p115 = scmp.eq.s32.totalorder %s26, 0
      %p116 = por %p114, %p115
      %s118 = sadd.s32 %s117, 1
      %p121 = scmp.eq.s32.totalorder %s20, 1
      %p122 = scmp.ne.s32.totalorder %s117, %s119
      %p123 = scmp.eq.s32.totalorder %s20, 0
      %p124 = por %p122, %p123
      %p125 = scmp.ne.s32.totalorder %s117, %s119
      %p126 = scmp.eq.s32.totalorder %s25, 1
      %p127 = por %p125, %p126
      %p128 = scmp.ne.s32.totalorder %s119, %s120
      %p129 = scmp.eq.s32.totalorder %s25, 0
      %p130 = por %p128, %p129
      %p131 = scmp.ne.s32.totalorder %s119, %s120
      %p132 = scmp.eq.s32.totalorder %s26, 1
      %p133 = por %p131, %p132
      %p135 = scmp.ne.s32.totalorder %s120, %s134
      %p136 = scmp.eq.s32.totalorder %s26, 0
      %p137 = por %p135, %p136
      %s139 = sadd.s32 %s138, 1
      %p142 = scmp.eq.s32.totalorder %s20, 1
      %p143 = scmp.ne.s32.totalorder %s138, %s140
      %p144 = scmp.eq.s32.totalorder %s20, 0
      %p145 = por %p143, %p144
      %p146 = scmp.ne.s32.totalorder %s138, %s140
      %p147 = scmp.eq.s32.totalorder %s25, 1
      %p148 = por %p146, %p147
      %p149 = scmp.ne.s32.totalorder %s140, %s141
      %p150 = scmp.eq.s32.totalorder %s25, 0
      %p151 = por %p149, %p150
      %p152 = scmp.ne.s32.totalorder %s140, %s141
      %p153 = scmp.eq.s32.totalorder %s26, 1
      %p154 = por %p152, %p153
      %p156 = scmp.ne.s32.totalorder %s141, %s155
      %p157 = scmp.eq.s32.totalorder %s26, 0
      %p158 = por %p156, %p157
      %s160 = sadd.s32 %s159, 1
      %p163 = scmp.eq.s32.totalorder %s20, 1
      %p164 = scmp.ne.s32.totalorder %s159, %s161
      %p165 = scmp.eq.s32.totalorder %s20, 0
      %p166 = por %p164, %p165
      %p167 = scmp.ne.s32.totalorder %s159, %s161
      %p168 = scmp.eq.s32.totalorder %s25, 1
      %p169 = por %p167, %p168
      %p170 = scmp.ne.s32.totalorder %s161, %s162
      %p171 = scmp.eq.s32.totalorder %s25, 0
      %p172 = por %p170, %p171
      %p173 = scmp.ne.s32.totalorder %s161, %s162
      %p174 = scmp.eq.s32.totalorder %s26, 1
      %p175 = por %p173, %p174
      %p177 = scmp.ne.s32.totalorder %s162, %s176
      %p178 = scmp.eq.s32.totalorder %s26, 0
      %p179 = por %p177, %p178
      %s180 = ssub.s32 %s20, %s27
      %p181 = scmp.eq.s32.totalorder %s180, 0
      %s183 = sadd.s32 %s182, 1
      %s184 = scalar_select %p181, %s182, %s183
      %p187 = pneg %p181
      %p188 = scmp.eq.s32.totalorder %s20, 1
      %p189 = por %p187, %p188
      %p190 = scmp.ne.s32.totalorder %s182, %s185
      %p191 = scmp.eq.s32.totalorder %s20, 0
      %p192 = por %p190, %p191
      %p193 = scmp.ne.s32.totalorder %s182, %s185
      %p194 = scmp.eq.s32.totalorder %s25, 1
      %p195 = por %p193, %p194
      %p196 = scmp.ne.s32.totalorder %s185, %s186
      %p197 = scmp.eq.s32.totalorder %s25, 0
      %p198 = por %p196, %p197
      %p199 = scmp.ne.s32.totalorder %s185, %s186
      %p200 = scmp.eq.s32.totalorder %s26, 1
      %p201 = por %p199, %p200
      %p203 = scmp.ne.s32.totalorder %s186, %s202
      %p204 = scmp.eq.s32.totalorder %s26, 0
      %p205 = por %p203, %p204
      %p206 = scmp.le.s32.totalorder 1, %s20
      %p207 = scmp.lt.s32.totalorder %s20, 3
      %p208 = pnand %p206, %p207
      %p209 = pneg %p208
      // Predicated region
      $region9: #{tpu_custom_call.1} parent=5 // pred_check
        _
      $region10: #{tpu_custom_call.1} parent=5 // pred_check_branch
        %211 = sbr.rel (%p208) target = $region12
      $region11: #{tpu_custom_call.1} parent=5 // pred_region
        %s212 = ssub.s32 %s20, 1
        // Predicated region
        $region13: #{tpu_custom_call.1} parent=11 // pred_check
          %p213 = pneg %p67
        $region14: #{tpu_custom_call.1} parent=11 // pred_check_branch
          %215 = sbr.rel (%p213) target = $region16
        $region15: #{tpu_custom_call.1} parent=11 // pred_region
          %s217 = ssub.s32 2048, 2048
          %218 = vsyncadd [#allocation6], %s217
          %s219 = sshll.u32 [#allocation5], 4
          %s220 = int_to_ptr.vmem [resolvable:$true] %s219
          %225 = dma.hbm_to_vmem [thread:$0]  %s1, 2048, %s220, [#allocation6], 64, 64, 4
        $region16: #{tpu_custom_call.1} parent=11 // pred_fallthru
          _
        // Predicated region
        $region17: #{tpu_custom_call.1} parent=11 // pred_check
          %p226 = pneg %p88
        $region18: #{tpu_custom_call.1} parent=11 // pred_check_branch
          %228 = sbr.rel (%p226) target = $region20
        $region19: #{tpu_custom_call.1} parent=11 // pred_region
          _
        $region20: #{tpu_custom_call.1} parent=11 // pred_fallthru
          _
        // Predicated region
        $region21: #{tpu_custom_call.1} parent=11 // pred_check
          %p229 = pneg %p109
        $region22: #{tpu_custom_call.1} parent=11 // pred_check_branch
          %231 = sbr.rel (%p229) target = $region24
        $region23: #{tpu_custom_call.1} parent=11 // pred_region
          _
        $region24: #{tpu_custom_call.1} parent=11 // pred_fallthru
          _
        // Predicated region
        $region25: #{tpu_custom_call.1} parent=11 // pred_check
          %p232 = pneg %p130
        $region26: #{tpu_custom_call.1} parent=11 // pred_check_branch
          %234 = sbr.rel (%p232) target = $region28
        $region27: #{tpu_custom_call.1} parent=11 // pred_region
          _
        $region28: #{tpu_custom_call.1} parent=11 // pred_fallthru
          _
        // Predicated region
        $region29: #{tpu_custom_call.1} parent=11 // pred_check
          %p235 = pneg %p151
        $region30: #{tpu_custom_call.1} parent=11 // pred_check_branch
          %237 = sbr.rel (%p235) target = $region32
        $region31: #{tpu_custom_call.1} parent=11 // pred_region
          %s239 = ssub.s32 1024, 1024
          %240 = vsyncadd [#allocation6], %s239
          %s241 = sshll.u32 [#allocation7], 4
          %s242 = int_to_ptr.vmem [resolvable:$true] %s241
          %247 = dma.hbm_to_vmem [thread:$0]  %s5, 1024, %s242, [#allocation6], 64, 64, 4
        $region32: #{tpu_custom_call.1} parent=11 // pred_fallthru
          _
        // Predicated region
        $region33: #{tpu_custom_call.1} parent=11 // pred_check
          %p248 = pneg %p172
        $region34: #{tpu_custom_call.1} parent=11 // pred_check_branch
          %250 = sbr.rel (%p248) target = $region36
        $region35: #{tpu_custom_call.1} parent=11 // pred_region
          _
        $region36: #{tpu_custom_call.1} parent=11 // pred_fallthru
          _
      $region12: #{tpu_custom_call.1} parent=5 // pred_fallthru
        _
      %p251 = scmp.lt.s32.totalorder %s20, 2
      // Predicated region
      $region37: #{tpu_custom_call.1} parent=5 // pred_check
        %p252 = pneg %p251
      $region38: #{tpu_custom_call.1} parent=5 // pred_check_branch
        %254 = sbr.rel (%p252) target = $region40
      $region39: #{tpu_custom_call.1} parent=5 // pred_region
        // Predicated region
        $region41: #{tpu_custom_call.1} parent=39 // pred_check
          %p255 = pneg %p40
        $region42: #{tpu_custom_call.1} parent=39 // pred_check_branch
          %257 = sbr.rel (%p255) target = $region44
        $region43: #{tpu_custom_call.1} parent=39 // pred_region
          %s258 = sand.u32 %s30, 1
          %s259 = scalar_lea.sflag [#allocation3], %s258
          %s260 = sand.u32 %s30, 1
          %s261 = smul.addr %s260, 128
          %s262 = scalar_lea.vmem [#allocation2], %s261
          %s263 = smul.u32 8, %s20
          %s265 = ssub.s32 2048, 2048
          %266 = vsyncadd %s259, %s265
          %s267 = smul.addr %s263, 2
          %s268 = smul.addr %s267, 128
          %s269 = scalar_lea.hbm %s0, %s268
          %s270 = sshll.u32 %s262, 4
          %s271 = int_to_ptr.vmem [resolvable:$true] %s270
          %276 = dma.hbm_to_vmem [thread:$0]  %s269, 2048, %s271, %s259, 256, 256, 16
        $region44: #{tpu_custom_call.1} parent=39 // pred_fallthru
          _
      $region40: #{tpu_custom_call.1} parent=5 // pred_fallthru
        _
      %p277 = scmp.le.s32.totalorder 1, %s20
      %p278 = scmp.lt.s32.totalorder %s20, 3
      %p279 = pnand %p277, %p278
      %p280 = pneg %p279
      // Predicated region
      $region45: #{tpu_custom_call.1} parent=5 // pred_check
        _
      $region46: #{tpu_custom_call.1} parent=5 // pred_check_branch
        %282 = sbr.rel (%p279) target = $region48
      $region47: #{tpu_custom_call.1} parent=5 // pred_region
        %s283 = ssub.s32 %s20, 1
        %s284 = sand.u32 %s33, 1
        %s285 = scalar_lea.sflag [#allocation3], %s284
        %s286 = sand.u32 %s33, 1
        %s287 = smul.addr %s286, 128
        %s288 = scalar_lea.vmem [#allocation2], %s287
        // Predicated region
        $region49: #{tpu_custom_call.1} parent=47 // pred_check
          %p289 = pneg %p46
        $region50: #{tpu_custom_call.1} parent=47 // pred_check_branch
          %291 = sbr.rel (%p289) target = $region52
        $region51: #{tpu_custom_call.1} parent=47 // pred_region
          %292 = dma.done %s285, 2048
        $region52: #{tpu_custom_call.1} parent=47 // pred_fallthru
          _
        // Predicated region
        $region53: #{tpu_custom_call.1} parent=47 // pred_check
          %p293 = pneg %p67
        $region54: #{tpu_custom_call.1} parent=47 // pred_check_branch
          %295 = sbr.rel (%p293) target = $region56
        $region55: #{tpu_custom_call.1} parent=47 // pred_region
          %296 = dma.done [#allocation6], 2048
        $region56: #{tpu_custom_call.1} parent=47 // pred_fallthru
          _
        // Predicated region
        $region57: #{tpu_custom_call.1} parent=47 // pred_check
          %p297 = pneg %p151
        $region58: #{tpu_custom_call.1} parent=47 // pred_check_branch
          %299 = sbr.rel (%p297) target = $region60
        $region59: #{tpu_custom_call.1} parent=47 // pred_region
          %300 = dma.done [#allocation6], 1024
        $region60: #{tpu_custom_call.1} parent=47 // pred_fallthru
          _
        %s301 = sand.u32 %s33, 1
        %s302 = scalar_lea.sflag [#allocation3], %s301
        %s303 = sand.u32 %s33, 1
        %s304 = smul.addr %s303, 128
        %s305 = scalar_lea.vmem [#allocation2], %s304
        %p306 = pneg %p46
        %p307 = pneg %p43
        %p308 = pneg %p67
        %p309 = pneg %p64
        %p310 = pneg %p88
        %p311 = pneg %p85
        %p312 = pneg %p109
        %p313 = pneg %p106
        %p314 = pneg %p130
        %p315 = pneg %p127
        %p316 = pneg %p151
        %p317 = pneg %p148
        %p318 = pneg %p172
        %p319 = pneg %p169
        %p320 = pneg %p198
        %p321 = pneg %p195
        %s322 = sand.u32 %s185, 1
        %s323 = scalar_lea.sflag [#allocation4], %s322
        %s324 = sand.u32 %s185, 1
        %s325 = smul.addr %s324, 32
        %s326 = scalar_lea.vmem [#allocation8], %s325
        %s327 = smul.u32 8, %s25
        %s328 = smul.u32 8, %s25
        %v330 = vld [vmem:[%s288] sm:$0xff]
        %v331 = vld [vmem:[%s288 + $0x8] sm:$0xff]
        %v332 = vld [vmem:[%s288 + $0x10] sm:$0xff]
        %v333 = vld [vmem:[%s288 + $0x18] sm:$0xff]
        %v334 = vld [vmem:[%s288 + $0x20] sm:$0xff]
        %v335 = vld [vmem:[%s288 + $0x28] sm:$0xff]
        %v336 = vld [vmem:[%s288 + $0x30] sm:$0xff]
        %v337 = vld [vmem:[%s288 + $0x38] sm:$0xff]
        %v338 = vld [vmem:[%s288 + $0x40] sm:$0xff]
        %v339 = vld [vmem:[%s288 + $0x48] sm:$0xff]
        %v340 = vld [vmem:[%s288 + $0x50] sm:$0xff]
        %v341 = vld [vmem:[%s288 + $0x58] sm:$0xff]
        %v342 = vld [vmem:[%s288 + $0x60] sm:$0xff]
        %v343 = vld [vmem:[%s288 + $0x68] sm:$0xff]
        %v344 = vld [vmem:[%s288 + $0x70] sm:$0xff]
        %v345 = vld [vmem:[%s288 + $0x78] sm:$0xff]
        %v346 = vpack.c.bf16 %v332, %v330
        %v347 = vpack.c.bf16 %v333, %v331
        %v348 = vpack.c.bf16 %v336, %v334
        %v349 = vpack.c.bf16 %v337, %v335
        %v350 = vpack.c.bf16 %v340, %v338
        %v351 = vpack.c.bf16 %v341, %v339
        %v352 = vpack.c.bf16 %v344, %v342
        %v353 = vpack.c.bf16 %v345, %v343
        %v354 = vld [vmem:[#allocation5] sm:$0xf]
        %v355 = vld [vmem:[#allocation5 + $0x4] sm:$0xf]
        %v356 = vld [vmem:[#allocation5 + $0x8] sm:$0xf]
        %v357 = vld [vmem:[#allocation5 + $0xc] sm:$0xf]
        %v358 = vld [vmem:[#allocation5 + $0x10] sm:$0xf]
        %v359 = vld [vmem:[#allocation5 + $0x14] sm:$0xf]
        %v360 = vld [vmem:[#allocation5 + $0x18] sm:$0xf]
        %v361 = vld [vmem:[#allocation5 + $0x1c] sm:$0xf]
        %v362 = vld [vmem:[#allocation5 + $0x20] sm:$0xf]
        %v363 = vld [vmem:[#allocation5 + $0x24] sm:$0xf]
        %v364 = vld [vmem:[#allocation5 + $0x28] sm:$0xf]
        %v365 = vld [vmem:[#allocation5 + $0x2c] sm:$0xf]
        %v366 = vld [vmem:[#allocation5 + $0x30] sm:$0xf]
        %v367 = vld [vmem:[#allocation5 + $0x34] sm:$0xf]
        %v368 = vld [vmem:[#allocation5 + $0x38] sm:$0xf]
        %v369 = vld [vmem:[#allocation5 + $0x3c] sm:$0xf]
        %v370 = vld [vmem:[#allocation5 + $0x40] sm:$0xf]
        %v371 = vld [vmem:[#allocation5 + $0x44] sm:$0xf]
        %v372 = vld [vmem:[#allocation5 + $0x48] sm:$0xf]
        %v373 = vld [vmem:[#allocation5 + $0x4c] sm:$0xf]
        %v374 = vld [vmem:[#allocation5 + $0x50] sm:$0xf]
        %v375 = vld [vmem:[#allocation5 + $0x54] sm:$0xf]
        %v376 = vld [vmem:[#allocation5 + $0x58] sm:$0xf]
        %v377 = vld [vmem:[#allocation5 + $0x5c] sm:$0xf]
        %v378 = vld [vmem:[#allocation5 + $0x60] sm:$0xf]
        %v379 = vld [vmem:[#allocation5 + $0x64] sm:$0xf]
        %v380 = vld [vmem:[#allocation5 + $0x68] sm:$0xf]
        %v381 = vld [vmem:[#allocation5 + $0x6c] sm:$0xf]
        %v382 = vld [vmem:[#allocation5 + $0x70] sm:$0xf]
        %v383 = vld [vmem:[#allocation5 + $0x74] sm:$0xf]
        %v384 = vld [vmem:[#allocation5 + $0x78] sm:$0xf]
        %v385 = vld [vmem:[#allocation5 + $0x7c] sm:$0xf]
        %v386 = vld [vmem:[%s2] sm:$0x1]
        %v388 = vlaneseq
        %v389 = vshrl.u32 %v388, 7
        %v390 = vsub.s32 0, %v389
        %v391 = vrot.slane %v386, %v390
        %v425 = vunpack.c.l.b16 %v354
        %v426 = vunpack.c.l.b16 %v355
        %v427 = vunpack.c.l.b16 %v356
        %v428 = vunpack.c.l.b16 %v357
        %v429 = vunpack.c.l.b16 %v358
        %v430 = vunpack.c.l.b16 %v359
        %v431 = vunpack.c.l.b16 %v360
        %v432 = vunpack.c.l.b16 %v361
        %v433 = vunpack.c.l.b16 %v362
        %v434 = vunpack.c.l.b16 %v363
        %v435 = vunpack.c.l.b16 %v364
        %v436 = vunpack.c.l.b16 %v365
        %v437 = vunpack.c.l.b16 %v366
        %v438 = vunpack.c.l.b16 %v367
        %v439 = vunpack.c.l.b16 %v368
        %v440 = vunpack.c.l.b16 %v369
        %v441 = vunpack.c.l.b16 %v370
        %v442 = vunpack.c.l.b16 %v371
        %v443 = vunpack.c.l.b16 %v372
        %v444 = vunpack.c.l.b16 %v373
        %v445 = vunpack.c.l.b16 %v374
        %v446 = vunpack.c.l.b16 %v375
        %v447 = vunpack.c.l.b16 %v376
        %v448 = vunpack.c.l.b16 %v377
        %v449 = vunpack.c.l.b16 %v378
        %v450 = vunpack.c.l.b16 %v379
        %v451 = vunpack.c.l.b16 %v380
        %v452 = vunpack.c.l.b16 %v381
        %v453 = vunpack.c.l.b16 %v382
        %v454 = vunpack.c.l.b16 %v383
        %v455 = vunpack.c.l.b16 %v384
        %v456 = vunpack.c.l.b16 %v385
        %v457 = vpack.c.b16 %v426, %v425
        %v458 = vpack.c.b16 %v428, %v427
        %v459 = vpack.c.b16 %v430, %v429
        %v460 = vpack.c.b16 %v432, %v431
        %v461 = vpack.c.b16 %v434, %v433
        %v462 = vpack.c.b16 %v436, %v435
        %v463 = vpack.c.b16 %v438, %v437
        %v464 = vpack.c.b16 %v440, %v439
        %v465 = vpack.c.b16 %v442, %v441
        %v466 = vpack.c.b16 %v444, %v443
        %v467 = vpack.c.b16 %v446, %v445
        %v468 = vpack.c.b16 %v448, %v447
        %v469 = vpack.c.b16 %v450, %v449
        %v470 = vpack.c.b16 %v452, %v451
        %v471 = vpack.c.b16 %v454, %v453
        %v472 = vpack.c.b16 %v456, %v455
        %489 = vmatprep.subr.bf16.mxu0 0
        %490 = vmatpush1.bf16.msra.mxu0 %v457
        %491 = vmatprep.subr.bf16.mxu0 0
        %492 = vmatpush1.bf16.msra.mxu0 %v458
        %493 = vmatprep.subr.bf16.mxu0 0
        %494 = vmatpush1.bf16.msra.mxu0 %v459
        %495 = vmatprep.subr.bf16.mxu0 0
        %496 = vmatpush1.bf16.msra.mxu0 %v460
        %497 = vmatprep.subr.bf16.mxu0 0
        %498 = vmatpush1.bf16.msra.mxu0 %v461
        %499 = vmatprep.subr.bf16.mxu0 0
        %500 = vmatpush1.bf16.msra.mxu0 %v462
        %501 = vmatprep.subr.bf16.mxu0 0
        %502 = vmatpush1.bf16.msra.mxu0 %v463
        %503 = vmatprep.subr.bf16.mxu0 0
        %504 = vmatpush1.bf16.msra.mxu0 %v464
        %505 = vmatprep.subr.bf16.mxu0 0
        %506 = vmatpush1.bf16.msra.mxu0 %v465
        %507 = vmatprep.subr.bf16.mxu0 0
        %508 = vmatpush1.bf16.msra.mxu0 %v466
        %509 = vmatprep.subr.bf16.mxu0 0
        %510 = vmatpush1.bf16.msra.mxu0 %v467
        %511 = vmatprep.subr.bf16.mxu0 0
        %512 = vmatpush1.bf16.msra.mxu0 %v468
        %513 = vmatprep.subr.bf16.mxu0 0
        %514 = vmatpush1.bf16.msra.mxu0 %v469
        %515 = vmatprep.subr.bf16.mxu0 0
        %516 = vmatpush1.bf16.msra.mxu0 %v470
        %517 = vmatprep.subr.bf16.mxu0 0
        %518 = vmatpush1.bf16.msra.mxu0 %v471
        %519 = vmatprep.subr.bf16.mxu0 0
        %520 = vmatpush1.bf16.msra.mxu0 %v472
        %521 = vmatprep.mubr.bf16.mxu0 %v347
        %522 = vmatmul.mubr.bf16.gmra.mrb[0].mxu0 %v346
        %v523 = vpop.f32.mrb[0].mxu0
        %v524 = vadd.f32 %v391, %v523
        %v525 = vpop.f32.mrb[0].mxu0
        %v526 = vpop.f32.mrb[0].mxu0
        %v527 = vadd.f32 %v391, %v526
        %v528 = vpop.f32.mrb[0].mxu0
        %529 = vmatprep.mubr.bf16.mxu0 %v349
        %530 = vmatmul.mubr.bf16.gmra.mrb[0].mxu0 %v348
        %v531 = vpop.f32.mrb[0].mxu0
        %v532 = vadd.f32 %v391, %v531
        %v533 = vpop.f32.mrb[0].mxu0
        %v534 = vpop.f32.mrb[0].mxu0
        %v535 = vadd.f32 %v391, %v534
        %v536 = vpop.f32.mrb[0].mxu0
        %537 = vmatprep.mubr.bf16.mxu0 %v351
        %538 = vmatmul.mubr.bf16.gmra.mrb[0].mxu0 %v350
        %v539 = vpop.f32.mrb[0].mxu0
        %v540 = vadd.f32 %v391, %v539
        %v541 = vpop.f32.mrb[0].mxu0
        %v542 = vpop.f32.mrb[0].mxu0
        %v543 = vadd.f32 %v391, %v542
        %v544 = vpop.f32.mrb[0].mxu0
        %545 = vmatprep.mubr.bf16.mxu0 %v353
        %546 = vmatmul.mubr.bf16.gmra.mrb[0].mxu0 %v352
        %v547 = vpop.f32.mrb[0].mxu0
        %v548 = vadd.f32 %v391, %v547
        %v549 = vpop.f32.mrb[0].mxu0
        %v550 = vpop.f32.mrb[0].mxu0
        %v551 = vadd.f32 %v391, %v550
        %v552 = vpop.f32.mrb[0].mxu0
        %553 = vdwg.mxu0
        %v554 = vlaneseq
        %v555 = vand.u32 %v554, 127
        %556 = vadd.xlane.f32.xlu0 %v524
        %v557 = vpop.xlane.xlu0 %556
        %558 = vadd.xlane.f32.xlu0 %v527
        %v559 = vpop.xlane.xlu0 %558
        %560 = vadd.xlane.f32.xlu0 %v532
        %v561 = vpop.xlane.xlu0 %560
        %562 = vadd.xlane.f32.xlu0 %v535
        %v563 = vpop.xlane.xlu0 %562
        %564 = vadd.xlane.f32.xlu0 %v540
        %v565 = vpop.xlane.xlu0 %564
        %566 = vadd.xlane.f32.xlu0 %v543
        %v567 = vpop.xlane.xlu0 %566
        %568 = vadd.xlane.f32.xlu0 %v548
        %v569 = vpop.xlane.xlu0 %568
        %570 = vadd.xlane.f32.xlu0 %v551
        %v571 = vpop.xlane.xlu0 %570
        %v572 = vmul.f32 %v557, 0.015625
        %v573 = vmul.f32 %v559, 0.015625
        %v574 = vmul.f32 %v561, 0.015625
        %v575 = vmul.f32 %v563, 0.015625
        %v576 = vmul.f32 %v565, 0.015625
        %v577 = vmul.f32 %v567, 0.015625
        %v578 = vmul.f32 %v569, 0.015625
        %v579 = vmul.f32 %v571, 0.015625
        %vm580 = vcmp.lt.s32.totalorder %v555, 64
        %v581 = vsub.f32 %v524, %v572
        %v582 = vsub.f32 %v527, %v573
        %v583 = vsub.f32 %v532, %v574
        %v584 = vsub.f32 %v535, %v575
        %v585 = vsub.f32 %v540, %v576
        %v586 = vsub.f32 %v543, %v577
        %v587 = vsub.f32 %v548, %v578
        %v588 = vsub.f32 %v551, %v579
        %v589 = vsel %vm580, 1, 0
        %vm590 = vcmp.eq.s32.totalorder %v589, 1
        %v591 = vsel %vm590, %v581, 0.0
        %v592 = vsel %vm590, %v582, 0.0
        %v593 = vsel %vm590, %v583, 0.0
        %v594 = vsel %vm590, %v584, 0.0
        %v595 = vsel %vm590, %v585, 0.0
        %v596 = vsel %vm590, %v586, 0.0
        %v597 = vsel %vm590, %v587, 0.0
        %v598 = vsel %vm590, %v588, 0.0
        %v599 = vmul.f32 %v591, %v591
        %v600 = vmul.f32 %v592, %v592
        %v601 = vmul.f32 %v593, %v593
        %v602 = vmul.f32 %v594, %v594
        %v603 = vmul.f32 %v595, %v595
        %v604 = vmul.f32 %v596, %v596
        %v605 = vmul.f32 %v597, %v597
        %v606 = vmul.f32 %v598, %v598
        %607 = vadd.xlane.f32.xlu0 %v599
        %v608 = vpop.xlane.xlu0 %607
        %609 = vadd.xlane.f32.xlu0 %v600
        %v610 = vpop.xlane.xlu0 %609
        %611 = vadd.xlane.f32.xlu0 %v601
        %v612 = vpop.xlane.xlu0 %611
        %613 = vadd.xlane.f32.xlu0 %v602
        %v614 = vpop.xlane.xlu0 %613
        %615 = vadd.xlane.f32.xlu0 %v603
        %v616 = vpop.xlane.xlu0 %615
        %617 = vadd.xlane.f32.xlu0 %v604
        %v618 = vpop.xlane.xlu0 %617
        %619 = vadd.xlane.f32.xlu0 %v605
        %v620 = vpop.xlane.xlu0 %619
        %621 = vadd.xlane.f32.xlu0 %v606
        %v622 = vpop.xlane.xlu0 %621
        %v623 = vmul.f32 %v608, 0.015625
        %v624 = vmul.f32 %v610, 0.015625
        %v625 = vmul.f32 %v612, 0.015625
        %v626 = vmul.f32 %v614, 0.015625
        %v627 = vmul.f32 %v616, 0.015625
        %v628 = vmul.f32 %v618, 0.015625
        %v629 = vmul.f32 %v620, 0.015625
        %v630 = vmul.f32 %v622, 0.015625
        %v631 = vadd.f32 %v623, 1e-05
        %v632 = vadd.f32 %v624, 1e-05
        %v633 = vadd.f32 %v625, 1e-05
        %v634 = vadd.f32 %v626, 1e-05
        %v635 = vadd.f32 %v627, 1e-05
        %v636 = vadd.f32 %v628, 1e-05
        %v637 = vadd.f32 %v629, 1e-05
        %v638 = vadd.f32 %v630, 1e-05
        %v639 = vrsqrt.pop %v631
        %v640 = vrsqrt.pop %v632
        %v641 = vrsqrt.pop %v633
        %v642 = vrsqrt.pop %v634
        %v643 = vrsqrt.pop %v635
        %v644 = vrsqrt.pop %v636
        %v645 = vrsqrt.pop %v637
        %v646 = vrsqrt.pop %v638
        %v647 = vmul.f32 %v591, %v639
        %v648 = vmul.f32 %v592, %v640
        %v649 = vmul.f32 %v593, %v641
        %v650 = vmul.f32 %v594, %v642
        %v651 = vmul.f32 %v595, %v643
        %v652 = vmul.f32 %v596, %v644
        %v653 = vmul.f32 %v597, %v645
        %v654 = vmul.f32 %v598, %v646
        %v655 = vld [vmem:[%s3] sm:$0x1]
        %v657 = vlaneseq
        %v658 = vshrl.u32 %v657, 7
        %v659 = vsub.s32 0, %v658
        %v660 = vrot.slane %v655, %v659
        %v662 = vmul.f32 %v647, %v660
        %v663 = vmul.f32 %v648, %v660
        %v664 = vmul.f32 %v649, %v660
        %v665 = vmul.f32 %v650, %v660
        %v666 = vmul.f32 %v651, %v660
        %v667 = vmul.f32 %v652, %v660
        %v668 = vmul.f32 %v653, %v660
        %v669 = vmul.f32 %v654, %v660
        %v670 = vld [vmem:[%s4] sm:$0x1]
        %v672 = vlaneseq
        %v673 = vshrl.u32 %v672, 7
        %v674 = vsub.s32 0, %v673
        %v675 = vrot.slane %v670, %v674
        %v677 = vadd.f32 %v662, %v675
        %v678 = vadd.f32 %v663, %v675
        %v679 = vadd.f32 %v664, %v675
        %v680 = vadd.f32 %v665, %v675
        %v681 = vadd.f32 %v666, %v675
        %v682 = vadd.f32 %v667, %v675
        %v683 = vadd.f32 %v668, %v675
        %v684 = vadd.f32 %v669, %v675
        %v685 = vpack.c.bf16 %v678, %v677
        %v686 = vpack.c.bf16 %v680, %v679
        %v687 = vpack.c.bf16 %v682, %v681
        %v688 = vpack.c.bf16 %v684, %v683
        %v689 = vld [vmem:[#allocation7] sm:$0xf]
        %v690 = vld [vmem:[#allocation7 + $0x4] sm:$0xf]
        %v691 = vld [vmem:[#allocation7 + $0x8] sm:$0xf]
        %v692 = vld [vmem:[#allocation7 + $0xc] sm:$0xf]
        %v693 = vld [vmem:[#allocation7 + $0x10] sm:$0xf]
        %v694 = vld [vmem:[#allocation7 + $0x14] sm:$0xf]
        %v695 = vld [vmem:[#allocation7 + $0x18] sm:$0xf]
        %v696 = vld [vmem:[#allocation7 + $0x1c] sm:$0xf]
        %v697 = vld [vmem:[#allocation7 + $0x20] sm:$0xf]
        %v698 = vld [vmem:[#allocation7 + $0x24] sm:$0xf]
        %v699 = vld [vmem:[#allocation7 + $0x28] sm:$0xf]
        %v700 = vld [vmem:[#allocation7 + $0x2c] sm:$0xf]
        %v701 = vld [vmem:[#allocation7 + $0x30] sm:$0xf]
        %v702 = vld [vmem:[#allocation7 + $0x34] sm:$0xf]
        %v703 = vld [vmem:[#allocation7 + $0x38] sm:$0xf]
        %v704 = vld [vmem:[#allocation7 + $0x3c] sm:$0xf]
        %v705 = vld [vmem:[%s6] sm:$0x1]
        %v707 = vlaneseq
        %v708 = vshrl.u32 %v707, 7
        %v709 = vsub.s32 0, %v708
        %v710 = vrot.slane %v705, %v709
        %v728 = vunpack.c.l.b16 %v689
        %v729 = vunpack.c.l.b16 %v690
        %v730 = vunpack.c.l.b16 %v691
        %v731 = vunpack.c.l.b16 %v692
        %v732 = vunpack.c.l.b16 %v693
        %v733 = vunpack.c.l.b16 %v694
        %v734 = vunpack.c.l.b16 %v695
        %v735 = vunpack.c.l.b16 %v696
        %v736 = vunpack.c.l.b16 %v697
        %v737 = vunpack.c.l.b16 %v698
        %v738 = vunpack.c.l.b16 %v699
        %v739 = vunpack.c.l.b16 %v700
        %v740 = vunpack.c.l.b16 %v701
        %v741 = vunpack.c.l.b16 %v702
        %v742 = vunpack.c.l.b16 %v703
        %v743 = vunpack.c.l.b16 %v704
        %v744 = vpack.c.b16 %v729, %v728
        %v745 = vpack.c.b16 %v731, %v730
        %v746 = vpack.c.b16 %v733, %v732
        %v747 = vpack.c.b16 %v735, %v734
        %v748 = vpack.c.b16 %v737, %v736
        %v749 = vpack.c.b16 %v739, %v738
        %v750 = vpack.c.b16 %v741, %v740
        %v751 = vpack.c.b16 %v743, %v742
        %760 = vmatprep.subr.bf16.mxu0 0
        %761 = vmatpush1.bf16.msra.mxu0 %v744
        %762 = vmatprep.subr.bf16.mxu0 0
        %763 = vmatpush1.bf16.msra.mxu0 %v745
        %764 = vmatprep.subr.bf16.mxu0 0
        %765 = vmatpush1.bf16.msra.mxu0 %v746
        %766 = vmatprep.subr.bf16.mxu0 0
        %767 = vmatpush1.bf16.msra.mxu0 %v747
        %768 = vmatprep.subr.bf16.mxu0 0
        %769 = vmatpush1.bf16.msra.mxu0 %v748
        %770 = vmatprep.subr.bf16.mxu0 0
        %771 = vmatpush1.bf16.msra.mxu0 %v749
        %772 = vmatprep.subr.bf16.mxu0 0
        %773 = vmatpush1.bf16.msra.mxu0 %v750
        %774 = vmatprep.subr.bf16.mxu0 0
        %775 = vmatpush1.bf16.msra.mxu0 %v751
        %776 = vmatprep.subr.bf16.mxu0 0
        %777 = vmatpush1.bf16.msra.mxu0 0
        %778 = vmatprep.subr.bf16.mxu0 0
        %779 = vmatpush1.bf16.msra.mxu0 0
        %780 = vmatprep.subr.bf16.mxu0 0
        %781 = vmatpush1.bf16.msra.mxu0 0
        %782 = vmatprep.subr.bf16.mxu0 0
        %783 = vmatpush1.bf16.msra.mxu0 0
        %784 = vmatprep.subr.bf16.mxu0 0
        %785 = vmatpush1.bf16.msra.mxu0 0
        %786 = vmatprep.subr.bf16.mxu0 0
        %787 = vmatpush1.bf16.msra.mxu0 0
        %788 = vmatprep.subr.bf16.mxu0 0
        %789 = vmatpush1.bf16.msra.mxu0 0
        %790 = vmatprep.subr.bf16.mxu0 0
        %791 = vmatpush1.bf16.msra.mxu0 0
        %792 = vmatprep.mubr.bf16.mxu0 0
        %793 = vmatmul.mubr.bf16.gmra.mrb[0].mxu0 %v685
        %v794 = vpop.f32.mrb[0].mxu0
        %v795 = vadd.f32 %v710, %v794
        %v796 = vpop.f32.mrb[0].mxu0
        %v797 = vpop.f32.mrb[0].mxu0
        %v798 = vadd.f32 %v710, %v797
        %v799 = vpop.f32.mrb[0].mxu0
        %800 = vmatprep.mubr.bf16.mxu0 0
        %801 = vmatmul.mubr.bf16.gmra.mrb[0].mxu0 %v686
        %v802 = vpop.f32.mrb[0].mxu0
        %v803 = vadd.f32 %v710, %v802
        %v804 = vpop.f32.mrb[0].mxu0
        %v805 = vpop.f32.mrb[0].mxu0
        %v806 = vadd.f32 %v710, %v805
        %v807 = vpop.f32.mrb[0].mxu0
        %808 = vmatprep.mubr.bf16.mxu0 0
        %809 = vmatmul.mubr.bf16.gmra.mrb[0].mxu0 %v687
        %v810 = vpop.f32.mrb[0].mxu0
        %v811 = vadd.f32 %v710, %v810
        %v812 = vpop.f32.mrb[0].mxu0
        %v813 = vpop.f32.mrb[0].mxu0
        %v814 = vadd.f32 %v710, %v813
        %v815 = vpop.f32.mrb[0].mxu0
        %816 = vmatprep.mubr.bf16.mxu0 0
        %817 = vmatmul.mubr.bf16.gmra.mrb[0].mxu0 %v688
        %v818 = vpop.f32.mrb[0].mxu0
        %v819 = vadd.f32 %v710, %v818
        %v820 = vpop.f32.mrb[0].mxu0
        %v821 = vpop.f32.mrb[0].mxu0
        %v822 = vadd.f32 %v710, %v821
        %v823 = vpop.f32.mrb[0].mxu0
        %824 = vdwg.mxu0
        %v825 = vpack.c.bf16 %v798, %v795
        %v826 = vpack.c.bf16 %v806, %v803
        %v827 = vpack.c.bf16 %v814, %v811
        %v828 = vpack.c.bf16 %v822, %v819
        %v833 = vunpack.c.l.b16 %v825
        %v834 = vunpack.c.h.b16 %v825
        %v835 = vunpack.c.l.b16 %v826
        %v836 = vunpack.c.h.b16 %v826
        %v837 = vunpack.c.l.b16 %v827
        %v838 = vunpack.c.h.b16 %v827
        %v839 = vunpack.c.l.b16 %v828
        %v840 = vunpack.c.h.b16 %v828
        %v841 = vpack.c.b16 %v833, %v833
        %v842 = vpack.c.b16 %v834, %v834
        %v843 = vpack.c.b16 %v835, %v835
        %v844 = vpack.c.b16 %v836, %v836
        %v845 = vpack.c.b16 %v837, %v837
        %v846 = vpack.c.b16 %v838, %v838
        %v847 = vpack.c.b16 %v839, %v839
        %v848 = vpack.c.b16 %v840, %v840
        %857 = vst [vmem:[%s326] sm:$0xf] %v841
        %858 = vst [vmem:[%s326 + $0x4] sm:$0xf] %v842
        %859 = vst [vmem:[%s326 + $0x8] sm:$0xf] %v843
        %860 = vst [vmem:[%s326 + $0xc] sm:$0xf] %v844
        %861 = vst [vmem:[%s326 + $0x10] sm:$0xf] %v845
        %862 = vst [vmem:[%s326 + $0x14] sm:$0xf] %v846
        %863 = vst [vmem:[%s326 + $0x18] sm:$0xf] %v847
        %864 = vst [vmem:[%s326 + $0x1c] sm:$0xf] %v848
        %s865 = sand.u32 %s185, 1
        %s866 = scalar_lea.sflag [#allocation4], %s865
        %s867 = sand.u32 %s185, 1
        %s868 = smul.addr %s867, 32
        %s869 = scalar_lea.vmem [#allocation8], %s868
        // Predicated region
        $region61: #{tpu_custom_call.1} parent=47 // pred_check
          %p870 = pneg %p195
        $region62: #{tpu_custom_call.1} parent=47 // pred_check_branch
          %872 = sbr.rel (%p870) target = $region64
        $region63: #{tpu_custom_call.1} parent=47 // pred_region
          %s873 = smul.u32 8, %s25
          %s875 = ssub.s32 512, 512
          %876 = vsyncadd %s866, %s875
          %s877 = smul.addr %s873, 64
          %s878 = scalar_lea.hbm %s7, %s877
          %s879 = sshll.u32 %s869, 4
          %s880 = int_to_ptr.vmem [resolvable:$true] %s879
          %885 = dma.vmem_to_hbm [thread:$0]  %s880, 512, %s878, %s866, 64, 64, 4
        $region64: #{tpu_custom_call.1} parent=47 // pred_fallthru
          _
      $region48: #{tpu_custom_call.1} parent=5 // pred_fallthru
        _
      %p886 = scmp.le.s32.totalorder 2, %s20
      // Predicated region
      $region65: #{tpu_custom_call.1} parent=5 // pred_check
        %p887 = pneg %p886
      $region66: #{tpu_custom_call.1} parent=5 // pred_check_branch
        %889 = sbr.rel (%p887) target = $region68
      $region67: #{tpu_custom_call.1} parent=5 // pred_region
        %s890 = ssub.s32 %s20, 2
        // Predicated region
        $region69: #{tpu_custom_call.1} parent=67 // pred_check
          %p891 = pneg %p201
        $region70: #{tpu_custom_call.1} parent=67 // pred_check_branch
          %893 = sbr.rel (%p891) target = $region72
        $region71: #{tpu_custom_call.1} parent=67 // pred_region
          %s894 = sand.u32 %s186, 1
          %s895 = scalar_lea.sflag [#allocation4], %s894
          %s896 = sand.u32 %s186, 1
          %s897 = smul.addr %s896, 32
          %s898 = scalar_lea.vmem [#allocation8], %s897
          %899 = dma.done %s895, 512
        $region72: #{tpu_custom_call.1} parent=67 // pred_fallthru
          _
      $region68: #{tpu_custom_call.1} parent=5 // pred_fallthru
        _
    $region6: #{tpu_custom_call.1} parent=1 // loop_footer
      %s24 = sadd.s32 1, %s20
    $region7: #{tpu_custom_call.1} parent=1 // loop_footer_branch
      %19 = sbr.rel target = $region3
    $region8: #{tpu_custom_call.1} parent=1 // loop_exit
      _
    %900 = vsyncpa [#allocation3], 1
    %s901 = scalar_lea.sflag [#allocation3], 1
    %902 = vsyncpa %s901, 1
    %903 = vsyncpa [#allocation6], 1
    %904 = vsyncpa [#allocation4], 1
    %s905 = scalar_lea.sflag [#allocation4], 1
    %906 = vsyncpa %s905, 1

</llo_original>
